<compile_context>
chip_gen: v7x
topology: tpu7x:2x2x1
jax: 0.10.0
libtpu: 0.0.40
codegen_flags: <defaults>
</compile_context>

<pallas_src>
import functools

import jax
import jax.numpy as jnp
from jax.experimental import pallas as pl
from jax.experimental.pallas import tpu as pltpu


def _round_up(a, b):
    return ((a + b - 1) // b) * b


def _linear_kernel(x_ref, w_ref, b_ref, o_ref):
    # x_ref: (tm, Kp) bf16, w_ref: (Kp, Np) bf16, b_ref: (1, Np) f32,
    # o_ref: (tm, Np).  f32 accumulation on the MXU, bias added in f32.
    acc = jnp.dot(x_ref[...], w_ref[...], preferred_element_type=jnp.float32)
    o_ref[...] = (acc + b_ref[...]).astype(o_ref.dtype)


def _pallas_linear(x2d, w_t, bias, *, out_dtype, tm=512):
    """y = x2d @ w_t + bias.  x2d: (M, K) bf16, w_t: (K, N) bf16, bias: (N,) f32."""
    M, K = x2d.shape
    N = w_t.shape[1]

    # Lane-dense output packing: fold `pack` consecutive output rows into one
    # 128-lane row via a block-diagonal weight (exact math).
    pack = 128 // N if (N < 128 and 128 % N == 0) else 1
    Kp, Np = pack * K, pack * N

    # Pick the largest M tile whose double-buffered working set fits a
    # conservative scoped-VMEM budget (safe for v7x's 64 MiB physical VMEM).
    out_bytes = jnp.dtype(out_dtype).itemsize
    budget = 24 * 1024 * 1024
    tm_rows = max(8, (tm // 8) * 8)
    while tm_rows > 8:
        need = (2 * tm_rows * Kp * 2            # x blocks (bf16, double-buffered)
                + 2 * tm_rows * Np * out_bytes  # out blocks (double-buffered)
                + 2 * (Kp * Np * 2 + Np * 4))   # resident weight + bias
        if need <= budget:
            break
        tm_rows //= 2
    tm_rows = max(8, (tm_rows // 8) * 8)

    Mq = pl.cdiv(M, pack)                       # packed row count
    tm_rows = min(tm_rows, _round_up(Mq, 8))
    n_tiles = pl.cdiv(Mq, tm_rows)
    M_pad = n_tiles * tm_rows * pack

    if M_pad != M:                              # pad tail instead of asserting
        x2d = jnp.pad(x2d, ((0, M_pad - M), (0, 0)))
    x_pack = x2d.reshape(M_pad // pack, Kp)     # free row-major reshape

    if pack > 1:
        # y_pack[r, j*N + n] = sum_k x[pack*r + j, k] * W[k, n]
        w_t = jnp.kron(jnp.eye(pack, dtype=w_t.dtype), w_t)   # (Kp, Np)
        bias = jnp.tile(bias, pack)                            # (Np,)
    bias2d = bias.reshape(1, Np).astype(jnp.float32)

    out = pl.pallas_call(
        _linear_kernel,
        out_shape=jax.ShapeDtypeStruct((M_pad // pack, Np), out_dtype),
        grid_spec=pltpu.PrefetchScalarGridSpec(
            num_scalar_prefetch=0,
            grid=(n_tiles,),
            in_specs=[
                pl.BlockSpec((tm_rows, Kp), lambda i: (i, 0)),
                pl.BlockSpec((Kp, Np), lambda i: (0, 0)),   # weight stays VMEM-resident
                pl.BlockSpec((1, Np), lambda i: (0, 0)),    # bias stays VMEM-resident
            ],
            out_specs=pl.BlockSpec((tm_rows, Np), lambda i: (i, 0)),
        ),
        compiler_params=pltpu.CompilerParams(
            dimension_semantics=("parallel",)),  # v7x: both TCs split the M tiles
    )(x_pack, w_t, bias2d)

    return out.reshape(M_pad, N)[:M]


def rearrange_patches(x, patch_size):
    """'b t c (h p1) (w p2) -> b t (h w) (p1 p2 c)' in plain JAX (glue)."""
    b, t, c, H, W = x.shape
    p = patch_size
    h, w = H // p, W // p
    x = x.reshape(b, t, c, h, p, w, p)           # b t c h p1 w p2
    x = jnp.transpose(x, (0, 1, 3, 5, 4, 6, 2))  # b t h w p1 p2 c
    x = x.reshape(b, t, h * w, p * p * c)        # b t (h w) (p1 p2 c)
    return x


@functools.partial(jax.jit, static_argnames=("patch_size",))
def patch_embedding_forward(x, weight, bias, *, patch_size):
    """x: (b, t, c, H, W); weight: (embed_dim, patch_dim) [torch Linear layout];
    bias: (embed_dim,). Returns (b, t, num_patches, embed_dim) in x.dtype."""
    b, t, c, H, W = x.shape
    embed_dim = weight.shape[0]
    # Cast to bf16 before the rearrange: XLA fuses convert+transpose, so the
    # patch tensor is written/read from HBM at half width.
    patches = rearrange_patches(x.astype(jnp.bfloat16), patch_size)
    np_, pd = patches.shape[2], patches.shape[3]
    x2d = patches.reshape(b * t * np_, pd)
    out2d = _pallas_linear(
        x2d,
        weight.astype(jnp.bfloat16).T,
        bias.astype(jnp.float32),
        out_dtype=x.dtype,
    )
    return out2d.reshape(b, t, np_, embed_dim)


if __name__ == "__main__":
    # Small shapes consistent with the module: img_size=16, patch_size=8,
    # in_channels=4, embed_dim=32, batch=2, frames t=2.
    img_size, patch_size, in_channels, embed_dim = 16, 8, 4, 32
    b, t = 2, 2
    num_patches = (img_size // patch_size) ** 2          # 4
    patch_dim = patch_size ** 2 * in_channels             # 256

    key = jax.random.PRNGKey(0)
    kx, kw, kb = jax.random.split(key, 3)
    x = jax.random.normal(kx, (b, t, in_channels, img_size, img_size),
                          dtype=jnp.float32)
    # Deterministic parameter init (torch.nn.Linear-style uniform scale).
    bound = 1.0 / (patch_dim ** 0.5)
    weight = jax.random.uniform(kw, (embed_dim, patch_dim), jnp.float32,
                                -bound, bound)
    bias = jax.random.uniform(kb, (embed_dim,), jnp.float32, -bound, bound)

    out = patch_embedding_forward(x, weight, bias, patch_size=patch_size)
    jax.block_until_ready(out)

    # Reference check in plain f32 JAX (tolerance loosened for bf16 streaming
    # with f32 accumulation).
    ref = rearrange_patches(x, patch_size) @ weight.T + bias
    assert out.shape == (b, t, num_patches, embed_dim), out.shape
    assert out.dtype == x.dtype, out.dtype
    max_err = float(jnp.max(jnp.abs(out - ref)))
    assert jnp.allclose(out, ref, atol=2e-2, rtol=2e-2), f"max err {max_err}"
    print("KERNEL_OK")
</pallas_src>

<mosaic_0001>
module attributes {stable_mosaic.version = 11 : i64} {
  func.func @_linear_kernel(%arg0: i32, %arg1: memref<8x1024xbf16, #tpu.memory_space<vmem>>, %arg2: memref<1024x128xbf16, #tpu.memory_space<vmem>>, %arg3: memref<1x128xf32, #tpu.memory_space<vmem>>, %arg4: memref<8x128xf32, #tpu.memory_space<vmem>>) attributes {dimension_semantics = [#tpu.dimension_semantics<parallel>], iteration_bounds = array<i64: 1>, scalar_prefetch = 0 : i64, scratch_operands = 0 : i64, tpu.core_type = #tpu.core_type<tc>, window_params = [{transform_indices = @transform_0, window_bounds = array<i64: 8, 1024>}, {pipeline_mode = #tpu.pipeline_mode<synchronous>, transform_indices = @transform_1, window_bounds = array<i64: 1024, 128>}, {pipeline_mode = #tpu.pipeline_mode<synchronous>, transform_indices = @transform_2, window_bounds = array<i64: 1, 128>}, {transform_indices = @transform_3, window_bounds = array<i64: 8, 128>}]} {
    %c0 = arith.constant 0 : index
    %c0_0 = arith.constant 0 : index
    %0 = vector.load %arg1[%c0, %c0_0] : memref<8x1024xbf16, #tpu.memory_space<vmem>>, vector<8x1024xbf16>
    %c0_1 = arith.constant 0 : index
    %c0_2 = arith.constant 0 : index
    %1 = vector.load %arg2[%c0_1, %c0_2] : memref<1024x128xbf16, #tpu.memory_space<vmem>>, vector<1024x128xbf16>
    %cst = arith.constant dense<0.000000e+00> : vector<8x128xf32>
    %2 = tpu.matmul %0, %1, %cst {dimension_numbers = #tpu.dot_dimension_numbers<[1], [0], [0], [1], [0, 0, 1, 1], [], []>} : vector<8x1024xbf16>, vector<1024x128xbf16>, vector<8x128xf32> -> vector<8x128xf32>
    %c0_3 = arith.constant 0 : index
    %c0_4 = arith.constant 0 : index
    %3 = vector.load %arg3[%c0_3, %c0_4] : memref<1x128xf32, #tpu.memory_space<vmem>>, vector<1x128xf32>
    %4 = vector.broadcast %3 : vector<1x128xf32> to vector<8x128xf32>
    %5 = arith.addf %2, %4 : vector<8x128xf32>
    %c0_5 = arith.constant 0 : index
    %c0_6 = arith.constant 0 : index
    %6 = vector.load %arg4[%c0_5, %c0_6] : memref<8x128xf32, #tpu.memory_space<vmem>>, vector<8x128xf32>
    tpu.vector_store %arg4[%c0_5, %c0_6], %5 {strides = array<i32>} : memref<8x128xf32, #tpu.memory_space<vmem>>, vector<8x128xf32>,
    return
  }
  func.func @transform_0(%arg0: i32) -> (i32, i32) {
    %c0_i32 = arith.constant 0 : i32
    %c0_i32_0 = arith.constant 0 : i32
    return %arg0, %c0_i32 : i32, i32
  }
  func.func @transform_1(%arg0: i32) -> (i32, i32) {
    %c0_i32 = arith.constant 0 : i32
    %c0_i32_0 = arith.constant 0 : i32
    %c0_i32_1 = arith.constant 0 : i32
    return %c0_i32, %c0_i32_0 : i32, i32
  }
  func.func @transform_2(%arg0: i32) -> (i32, i32) {
    %c0_i32 = arith.constant 0 : i32
    %c0_i32_0 = arith.constant 0 : i32
    %c0_i32_1 = arith.constant 0 : i32
    return %c0_i32, %c0_i32_0 : i32, i32
  }
  func.func @transform_3(%arg0: i32) -> (i32, i32) {
    %c0_i32 = arith.constant 0 : i32
    %c0_i32_0 = arith.constant 0 : i32
    return %arg0, %c0_i32 : i32, i32
  }
}

</mosaic_0001>

<llo_original>
// kernel: tile.8
$region0: #{tile.8}
  #allocation0 [shape = 's32[1]{0}', space=sflag, size = 0x4, scoped, tag = 'scoped memory for tile.8']
  %s0 = inlined_call_operand.vmem [shape: f32[32], index: 0, kind: input, shape index: {}]
  %s1 = inlined_call_operand.vmem [shape: f32[4,32], index: 1, kind: output, shape index: {}]
  // Predicated region
  $region2: #{tile.8} parent=0 // pred_check
    _
  $region3: #{tile.8} parent=0 // pred_check_branch
    %3 = sbr.rel (0) target = $region5
  $region4: #{tile.8} parent=0 // pred_region
    _
  $region5: #{tile.8} parent=0 // pred_fallthru
    _
  %v4 = vld [vmem:[%s0] ss:$0 sm:$0xff]
  %5 = vst [vmem:[%s1] sm:$0xf] %v4

// kernel: tile.9
$region0: #{tile.9}
  %s0 = inlined_call_operand.vmem [shape: f32[4,32], index: 0, kind: input, shape index: {}]
  %s1 = inlined_call_operand.vmem [shape: f32[1,128], index: 1, kind: output, shape index: {}]
  $region1: #{tile.9} parent=0
    #allocation0 [shape = 'u8[4096]{0}', space=vmem, size = 0x1000, scoped, tag = 'scoped mem for output reshape']
    #allocation1 [shape = 'u8[4096]{0}', space=vmem, size = 0x1000, scoped, tag = 'scoped mem for input reshape']
    %s3 = sshllo.u32 0, 4
    %v4 = vld [vmem:[%s0] sm:%s3]
    %5 = vst [vmem:[#allocation1] sm:%s3] %v4
    %v6 = vld [vmem:[#allocation1] sm:$0x1]
    %vm7 = vcmask 261120
    %8 = vst.msk [vmem:[#allocation0] sm:$0x1] %vm7, %v6
    %s9 = scalar_lea.vmem [#allocation1], 3
    %v10 = vld [vmem:[%s9] sm:$0x1]
    %11 = vrot.lane.b32.xlu0 %v10, 96
    %v12 = vpop.permute.xlu0 %11
    %vm13 = vcmask 1048320
    %14 = vst.msk [vmem:[#allocation0] sm:$0x1] %vm13, %v12
    %s15 = scalar_lea.vmem [#allocation1], 2
    %v16 = vld [vmem:[%s15] sm:$0x1]
    %17 = vrot.lane.b32.xlu0 %v16, 64
    %v18 = vpop.permute.xlu0 %17
    %vm19 = vcmask 785920
    %20 = vst.msk [vmem:[#allocation0] sm:$0x1] %vm19, %v18
    %s21 = scalar_lea.vmem [#allocation1], 1
    %v22 = vld [vmem:[%s21] sm:$0x1]
    %23 = vrot.lane.b32.xlu0 %v22, 32
    %v24 = vpop.permute.xlu0 %23
    %vm25 = vcmask 523520
    %26 = vst.msk [vmem:[#allocation0] sm:$0x1] %vm25, %v24
    %s28 = sshllo.u32 0, 1
    %v30 = vld [vmem:[#allocation0] sm:%s28]
    %s31 = sshllo.u32 0, 1
    %32 = vst [vmem:[%s1] sm:%s31] %v30

// kernel: patch_embedding_forward.1
$region0: #{patch_embedding_forward.1}
  #allocation0 [shape = 'u32[]', space=smem, size = 0x4, offset = 0x4, fixed_abs, tag = 'smem constant byte address 0x4 - core index']
  #allocation1 [shape = 'u32[144,128]{1,0:T(1,128)}', space=vmem, size = 0x12000, scoped, tag = 'internal scratch']
  %s0 = inlined_call_operand.vmem [shape: bf16[8,1024], index: 0, kind: input, shape index: {}]
  %s1 = inlined_call_operand.vmem [shape: bf16[1024,128], index: 1, kind: input, shape index: {}]
  %s2 = inlined_call_operand.vmem [shape: f32[1,128], index: 2, kind: input, shape index: {}]
  %s3 = inlined_call_operand.vmem [shape: f32[8,128], index: 3, kind: output, shape index: {}]
  %s4 = sld [smem:[#allocation0]]
  $region22: #{patch_embedding_forward.1} parent=0
    _
  %s6 = ssub.s32 1, %s4
  %s7 = scalar_select 0, %s6, %s4
  // Predicated region
  $region2: #{patch_embedding_forward.1} parent=0 // pred_check
    _
  $region3: #{patch_embedding_forward.1} parent=0 // pred_check_branch
    %9 = sbr.rel (0) target = $region5
  $region4: #{patch_embedding_forward.1} parent=0 // pred_region
    _
  $region5: #{patch_embedding_forward.1} parent=0 // pred_fallthru
    _
  // Predicated region
  $region6: #{patch_embedding_forward.1} parent=0 // pred_check
    _
  $region7: #{patch_embedding_forward.1} parent=0 // pred_check_branch
    %11 = sbr.rel (0) target = $region9
  $region8: #{patch_embedding_forward.1} parent=0 // pred_region
    _
  $region9: #{patch_embedding_forward.1} parent=0 // pred_fallthru
    _
  // Predicated region
  $region10: #{patch_embedding_forward.1} parent=0 // pred_check
    _
  $region11: #{patch_embedding_forward.1} parent=0 // pred_check_branch
    %13 = sbr.rel (0) target = $region13
  $region12: #{patch_embedding_forward.1} parent=0 // pred_region
    _
  $region13: #{patch_embedding_forward.1} parent=0 // pred_fallthru
    _
  %v15 = vld [vmem:[%s0] sm:$0xff]
  %v16 = vld [vmem:[%s0 + $0x8] sm:$0xff]
  %v17 = vld [vmem:[%s0 + $0x10] sm:$0xff]
  %v18 = vld [vmem:[%s0 + $0x18] sm:$0xff]
  %v19 = vld [vmem:[%s1] sm:$0xf]
  %v20 = vld [vmem:[%s1 + $0x4] sm:$0xf]
  %v21 = vld [vmem:[%s1 + $0x8] sm:$0xf]
  %v22 = vld [vmem:[%s1 + $0xc] sm:$0xf]
  %v23 = vld [vmem:[%s1 + $0x10] sm:$0xf]
  %v24 = vld [vmem:[%s1 + $0x14] sm:$0xf]
  %v25 = vld [vmem:[%s1 + $0x18] sm:$0xf]
  %v26 = vld [vmem:[%s1 + $0x1c] sm:$0xf]
  %v27 = vld [vmem:[%s1 + $0x20] sm:$0xf]
  %v28 = vld [vmem:[%s1 + $0x24] sm:$0xf]
  %v29 = vld [vmem:[%s1 + $0x28] sm:$0xf]
  %v30 = vld [vmem:[%s1 + $0x2c] sm:$0xf]
  %v31 = vld [vmem:[%s1 + $0x30] sm:$0xf]
  %v32 = vld [vmem:[%s1 + $0x34] sm:$0xf]
  %v33 = vld [vmem:[%s1 + $0x38] sm:$0xf]
  %v34 = vld [vmem:[%s1 + $0x3c] sm:$0xf]
  %v35 = vld [vmem:[%s1 + $0x40] sm:$0xf]
  %v36 = vld [vmem:[%s1 + $0x44] sm:$0xf]
  %v37 = vld [vmem:[%s1 + $0x48] sm:$0xf]
  %v38 = vld [vmem:[%s1 + $0x4c] sm:$0xf]
  %v39 = vld [vmem:[%s1 + $0x50] sm:$0xf]
  %v40 = vld [vmem:[%s1 + $0x54] sm:$0xf]
  %v41 = vld [vmem:[%s1 + $0x58] sm:$0xf]
  %v42 = vld [vmem:[%s1 + $0x5c] sm:$0xf]
  %v43 = vld [vmem:[%s1 + $0x60] sm:$0xf]
  %v44 = vld [vmem:[%s1 + $0x64] sm:$0xf]
  %v45 = vld [vmem:[%s1 + $0x68] sm:$0xf]
  %v46 = vld [vmem:[%s1 + $0x6c] sm:$0xf]
  %v47 = vld [vmem:[%s1 + $0x70] sm:$0xf]
  %v48 = vld [vmem:[%s1 + $0x74] sm:$0xf]
  %v49 = vld [vmem:[%s1 + $0x78] sm:$0xf]
  %v50 = vld [vmem:[%s1 + $0x7c] sm:$0xf]
  %v51 = vld [vmem:[%s1 + $0x80] sm:$0xf]
  %v52 = vld [vmem:[%s1 + $0x84] sm:$0xf]
  %v53 = vld [vmem:[%s1 + $0x88] sm:$0xf]
  %v54 = vld [vmem:[%s1 + $0x8c] sm:$0xf]
  %v55 = vld [vmem:[%s1 + $0x90] sm:$0xf]
  %v56 = vld [vmem:[%s1 + $0x94] sm:$0xf]
  %v57 = vld [vmem:[%s1 + $0x98] sm:$0xf]
  %v58 = vld [vmem:[%s1 + $0x9c] sm:$0xf]
  %v59 = vld [vmem:[%s1 + $0xa0] sm:$0xf]
  %v60 = vld [vmem:[%s1 + $0xa4] sm:$0xf]
  %v61 = vld [vmem:[%s1 + $0xa8] sm:$0xf]
  %v62 = vld [vmem:[%s1 + $0xac] sm:$0xf]
  %v63 = vld [vmem:[%s1 + $0xb0] sm:$0xf]
  %v64 = vld [vmem:[%s1 + $0xb4] sm:$0xf]
  %v65 = vld [vmem:[%s1 + $0xb8] sm:$0xf]
  %v66 = vld [vmem:[%s1 + $0xbc] sm:$0xf]
  %v67 = vld [vmem:[%s1 + $0xc0] sm:$0xf]
  %v68 = vld [vmem:[%s1 + $0xc4] sm:$0xf]
  %v69 = vld [vmem:[%s1 + $0xc8] sm:$0xf]
  %v70 = vld [vmem:[%s1 + $0xcc] sm:$0xf]
  %v71 = vld [vmem:[%s1 + $0xd0] sm:$0xf]
  %v72 = vld [vmem:[%s1 + $0xd4] sm:$0xf]
  %v73 = vld [vmem:[%s1 + $0xd8] sm:$0xf]
  %v74 = vld [vmem:[%s1 + $0xdc] sm:$0xf]
  %v75 = vld [vmem:[%s1 + $0xe0] sm:$0xf]
  %v76 = vld [vmem:[%s1 + $0xe4] sm:$0xf]
  %v77 = vld [vmem:[%s1 + $0xe8] sm:$0xf]
  %v78 = vld [vmem:[%s1 + $0xec] sm:$0xf]
  %v79 = vld [vmem:[%s1 + $0xf0] sm:$0xf]
  %v80 = vld [vmem:[%s1 + $0xf4] sm:$0xf]
  %v81 = vld [vmem:[%s1 + $0xf8] sm:$0xf]
  %v82 = vld [vmem:[%s1 + $0xfc] sm:$0xf]
  %v83 = vld [vmem:[%s1 + $0x100] sm:$0xf]
  %v84 = vld [vmem:[%s1 + $0x104] sm:$0xf]
  %v85 = vld [vmem:[%s1 + $0x108] sm:$0xf]
  %v86 = vld [vmem:[%s1 + $0x10c] sm:$0xf]
  %v87 = vld [vmem:[%s1 + $0x110] sm:$0xf]
  %v88 = vld [vmem:[%s1 + $0x114] sm:$0xf]
  %v89 = vld [vmem:[%s1 + $0x118] sm:$0xf]
  %v90 = vld [vmem:[%s1 + $0x11c] sm:$0xf]
  %v91 = vld [vmem:[%s1 + $0x120] sm:$0xf]
  %v92 = vld [vmem:[%s1 + $0x124] sm:$0xf]
  %v93 = vld [vmem:[%s1 + $0x128] sm:$0xf]
  %v94 = vld [vmem:[%s1 + $0x12c] sm:$0xf]
  %v95 = vld [vmem:[%s1 + $0x130] sm:$0xf]
  %v96 = vld [vmem:[%s1 + $0x134] sm:$0xf]
  %v97 = vld [vmem:[%s1 + $0x138] sm:$0xf]
  %v98 = vld [vmem:[%s1 + $0x13c] sm:$0xf]
  %v99 = vld [vmem:[%s1 + $0x140] sm:$0xf]
  %v100 = vld [vmem:[%s1 + $0x144] sm:$0xf]
  %v101 = vld [vmem:[%s1 + $0x148] sm:$0xf]
  %v102 = vld [vmem:[%s1 + $0x14c] sm:$0xf]
  %v103 = vld [vmem:[%s1 + $0x150] sm:$0xf]
  %v104 = vld [vmem:[%s1 + $0x154] sm:$0xf]
  %v105 = vld [vmem:[%s1 + $0x158] sm:$0xf]
  %v106 = vld [vmem:[%s1 + $0x15c] sm:$0xf]
  %v107 = vld [vmem:[%s1 + $0x160] sm:$0xf]
  %v108 = vld [vmem:[%s1 + $0x164] sm:$0xf]
  %v109 = vld [vmem:[%s1 + $0x168] sm:$0xf]
  %v110 = vld [vmem:[%s1 + $0x16c] sm:$0xf]
  %v111 = vld [vmem:[%s1 + $0x170] sm:$0xf]
  %v112 = vld [vmem:[%s1 + $0x174] sm:$0xf]
  %v113 = vld [vmem:[%s1 + $0x178] sm:$0xf]
  %v114 = vld [vmem:[%s1 + $0x17c] sm:$0xf]
  %v115 = vld [vmem:[%s1 + $0x180] sm:$0xf]
  %v116 = vld [vmem:[%s1 + $0x184] sm:$0xf]
  %v117 = vld [vmem:[%s1 + $0x188] sm:$0xf]
  %v118 = vld [vmem:[%s1 + $0x18c] sm:$0xf]
  %v119 = vld [vmem:[%s1 + $0x190] sm:$0xf]
  %v120 = vld [vmem:[%s1 + $0x194] sm:$0xf]
  %v121 = vld [vmem:[%s1 + $0x198] sm:$0xf]
  %v122 = vld [vmem:[%s1 + $0x19c] sm:$0xf]
  %v123 = vld [vmem:[%s1 + $0x1a0] sm:$0xf]
  %v124 = vld [vmem:[%s1 + $0x1a4] sm:$0xf]
  %v125 = vld [vmem:[%s1 + $0x1a8] sm:$0xf]
  %v126 = vld [vmem:[%s1 + $0x1ac] sm:$0xf]
  %v127 = vld [vmem:[%s1 + $0x1b0] sm:$0xf]
  %v128 = vld [vmem:[%s1 + $0x1b4] sm:$0xf]
  %v129 = vld [vmem:[%s1 + $0x1b8] sm:$0xf]
  %v130 = vld [vmem:[%s1 + $0x1bc] sm:$0xf]
  %v131 = vld [vmem:[%s1 + $0x1c0] sm:$0xf]
  %v132 = vld [vmem:[%s1 + $0x1c4] sm:$0xf]
  %v133 = vld [vmem:[%s1 + $0x1c8] sm:$0xf]
  %v134 = vld [vmem:[%s1 + $0x1cc] sm:$0xf]
  %v135 = vld [vmem:[%s1 + $0x1d0] sm:$0xf]
  %v136 = vld [vmem:[%s1 + $0x1d4] sm:$0xf]
  %v137 = vld [vmem:[%s1 + $0x1d8] sm:$0xf]
  %v138 = vld [vmem:[%s1 + $0x1dc] sm:$0xf]
  %v139 = vld [vmem:[%s1 + $0x1e0] sm:$0xf]
  %v140 = vld [vmem:[%s1 + $0x1e4] sm:$0xf]
  %v141 = vld [vmem:[%s1 + $0x1e8] sm:$0xf]
  %v142 = vld [vmem:[%s1 + $0x1ec] sm:$0xf]
  %v143 = vld [vmem:[%s1 + $0x1f0] sm:$0xf]
  %v144 = vld [vmem:[%s1 + $0x1f4] sm:$0xf]
  %v145 = vld [vmem:[%s1 + $0x1f8] sm:$0xf]
  %v146 = vld [vmem:[%s1 + $0x1fc] sm:$0xf]
  %v147 = vld [vmem:[%s2] sm:$0x1]
  %v149 = vlaneseq
  %v150 = vshrl.u32 %v149, 7
  %v151 = vsub.s32 0, %v150
  %v152 = vrot.slane %v147, %v151
  %v158 = vunpack.c.l.b16 %v15
  %v159 = vunpack.c.h.b16 %v15
  %v160 = vunpack.c.l.b16 %v16
  %v161 = vunpack.c.h.b16 %v16
  %v162 = vunpack.c.l.b16 %v17
  %v163 = vunpack.c.h.b16 %v17
  %v164 = vunpack.c.l.b16 %v18
  %v165 = vunpack.c.h.b16 %v18
  %v166 = vpack.c.b16 %v158, %v158
  %v167 = vpack.c.b16 %v159, %v159
  %v168 = vpack.c.b16 %v160, %v160
  %v169 = vpack.c.b16 %v161, %v161
  %v170 = vpack.c.b16 %v162, %v162
  %v171 = vpack.c.b16 %v163, %v163
  %v172 = vpack.c.b16 %v164, %v164
  %v173 = vpack.c.b16 %v165, %v165
  %v310 = vunpack.c.l.b16 %v19
  %v311 = vunpack.c.l.b16 %v20
  %v312 = vunpack.c.l.b16 %v21
  %v313 = vunpack.c.l.b16 %v22
  %v314 = vunpack.c.l.b16 %v23
  %v315 = vunpack.c.l.b16 %v24
  %v316 = vunpack.c.l.b16 %v25
  %v317 = vunpack.c.l.b16 %v26
  %v318 = vunpack.c.l.b16 %v27
  %v319 = vunpack.c.l.b16 %v28
  %v320 = vunpack.c.l.b16 %v29
  %v321 = vunpack.c.l.b16 %v30
  %v322 = vunpack.c.l.b16 %v31
  %v323 = vunpack.c.l.b16 %v32
  %v324 = vunpack.c.l.b16 %v33
  %v325 = vunpack.c.l.b16 %v34
  %v326 = vunpack.c.l.b16 %v35
  %v327 = vunpack.c.l.b16 %v36
  %v328 = vunpack.c.l.b16 %v37
  %v329 = vunpack.c.l.b16 %v38
  %v330 = vunpack.c.l.b16 %v39
  %v331 = vunpack.c.l.b16 %v40
  %v332 = vunpack.c.l.b16 %v41
  %v333 = vunpack.c.l.b16 %v42
  %v334 = vunpack.c.l.b16 %v43
  %v335 = vunpack.c.l.b16 %v44
  %v336 = vunpack.c.l.b16 %v45
  %v337 = vunpack.c.l.b16 %v46
  %v338 = vunpack.c.l.b16 %v47
  %v339 = vunpack.c.l.b16 %v48
  %v340 = vunpack.c.l.b16 %v49
  %v341 = vunpack.c.l.b16 %v50
  %v342 = vunpack.c.l.b16 %v51
  %v343 = vunpack.c.l.b16 %v52
  %v344 = vunpack.c.l.b16 %v53
  %v345 = vunpack.c.l.b16 %v54
  %v346 = vunpack.c.l.b16 %v55
  %v347 = vunpack.c.l.b16 %v56
  %v348 = vunpack.c.l.b16 %v57
  %v349 = vunpack.c.l.b16 %v58
  %v350 = vunpack.c.l.b16 %v59
  %v351 = vunpack.c.l.b16 %v60
  %v352 = vunpack.c.l.b16 %v61
  %v353 = vunpack.c.l.b16 %v62
  %v354 = vunpack.c.l.b16 %v63
  %v355 = vunpack.c.l.b16 %v64
  %v356 = vunpack.c.l.b16 %v65
  %v357 = vunpack.c.l.b16 %v66
  %v358 = vunpack.c.l.b16 %v67
  %v359 = vunpack.c.l.b16 %v68
  %v360 = vunpack.c.l.b16 %v69
  %v361 = vunpack.c.l.b16 %v70
  %v362 = vunpack.c.l.b16 %v71
  %v363 = vunpack.c.l.b16 %v72
  %v364 = vunpack.c.l.b16 %v73
  %v365 = vunpack.c.l.b16 %v74
  %v366 = vunpack.c.l.b16 %v75
  %v367 = vunpack.c.l.b16 %v76
  %v368 = vunpack.c.l.b16 %v77
  %v369 = vunpack.c.l.b16 %v78
  %v370 = vunpack.c.l.b16 %v79
  %v371 = vunpack.c.l.b16 %v80
  %v372 = vunpack.c.l.b16 %v81
  %v373 = vunpack.c.l.b16 %v82
  %v374 = vunpack.c.l.b16 %v83
  %v375 = vunpack.c.l.b16 %v84
  %v376 = vunpack.c.l.b16 %v85
  %v377 = vunpack.c.l.b16 %v86
  %v378 = vunpack.c.l.b16 %v87
  %v379 = vunpack.c.l.b16 %v88
  %v380 = vunpack.c.l.b16 %v89
  %v381 = vunpack.c.l.b16 %v90
  %v382 = vunpack.c.l.b16 %v91
  %v383 = vunpack.c.l.b16 %v92
  %v384 = vunpack.c.l.b16 %v93
  %v385 = vunpack.c.l.b16 %v94
  %v386 = vunpack.c.l.b16 %v95
  %v387 = vunpack.c.l.b16 %v96
  %v388 = vunpack.c.l.b16 %v97
  %v389 = vunpack.c.l.b16 %v98
  %v390 = vunpack.c.l.b16 %v99
  %v391 = vunpack.c.l.b16 %v100
  %v392 = vunpack.c.l.b16 %v101
  %v393 = vunpack.c.l.b16 %v102
  %v394 = vunpack.c.l.b16 %v103
  %v395 = vunpack.c.l.b16 %v104
  %v396 = vunpack.c.l.b16 %v105
  %v397 = vunpack.c.l.b16 %v106
  %v398 = vunpack.c.l.b16 %v107
  %v399 = vunpack.c.l.b16 %v108
  %v400 = vunpack.c.l.b16 %v109
  %v401 = vunpack.c.l.b16 %v110
  %v402 = vunpack.c.l.b16 %v111
  %v403 = vunpack.c.l.b16 %v112
  %v404 = vunpack.c.l.b16 %v113
  %v405 = vunpack.c.l.b16 %v114
  %v406 = vunpack.c.l.b16 %v115
  %v407 = vunpack.c.l.b16 %v116
  %v408 = vunpack.c.l.b16 %v117
  %v409 = vunpack.c.l.b16 %v118
  %v410 = vunpack.c.l.b16 %v119
  %v411 = vunpack.c.l.b16 %v120
  %v412 = vunpack.c.l.b16 %v121
  %v413 = vunpack.c.l.b16 %v122
  %v414 = vunpack.c.l.b16 %v123
  %v415 = vunpack.c.l.b16 %v124
  %v416 = vunpack.c.l.b16 %v125
  %v417 = vunpack.c.l.b16 %v126
  %v418 = vunpack.c.l.b16 %v127
  %v419 = vunpack.c.l.b16 %v128
  %v420 = vunpack.c.l.b16 %v129
  %v421 = vunpack.c.l.b16 %v130
  %v422 = vunpack.c.l.b16 %v131
  %v423 = vunpack.c.l.b16 %v132
  %v424 = vunpack.c.l.b16 %v133
  %v425 = vunpack.c.l.b16 %v134
  %v426 = vunpack.c.l.b16 %v135
  %v427 = vunpack.c.l.b16 %v136
  %v428 = vunpack.c.l.b16 %v137
  %v429 = vunpack.c.l.b16 %v138
  %v430 = vunpack.c.l.b16 %v139
  %v431 = vunpack.c.l.b16 %v140
  %v432 = vunpack.c.l.b16 %v141
  %v433 = vunpack.c.l.b16 %v142
  %v434 = vunpack.c.l.b16 %v143
  %v435 = vunpack.c.l.b16 %v144
  %v436 = vunpack.c.l.b16 %v145
  %v437 = vunpack.c.l.b16 %v146
  %v438 = vpack.c.b16 %v311, %v310
  %v439 = vpack.c.b16 %v313, %v312
  %v440 = vpack.c.b16 %v315, %v314
  %v441 = vpack.c.b16 %v317, %v316
  %v442 = vpack.c.b16 %v319, %v318
  %v443 = vpack.c.b16 %v321, %v320
  %v444 = vpack.c.b16 %v323, %v322
  %v445 = vpack.c.b16 %v325, %v324
  %v446 = vpack.c.b16 %v327, %v326
  %v447 = vpack.c.b16 %v329, %v328
  %v448 = vpack.c.b16 %v331, %v330
  %v449 = vpack.c.b16 %v333, %v332
  %v450 = vpack.c.b16 %v335, %v334
  %v451 = vpack.c.b16 %v337, %v336
  %v452 = vpack.c.b16 %v339, %v338
  %v453 = vpack.c.b16 %v341, %v340
  %v454 = vpack.c.b16 %v343, %v342
  %v455 = vpack.c.b16 %v345, %v344
  %v456 = vpack.c.b16 %v347, %v346
  %v457 = vpack.c.b16 %v349, %v348
  %v458 = vpack.c.b16 %v351, %v350
  %v459 = vpack.c.b16 %v353, %v352
  %v460 = vpack.c.b16 %v355, %v354
  %v461 = vpack.c.b16 %v357, %v356
  %v462 = vpack.c.b16 %v359, %v358
  %v463 = vpack.c.b16 %v361, %v360
  %v464 = vpack.c.b16 %v363, %v362
  %v465 = vpack.c.b16 %v365, %v364
  %v466 = vpack.c.b16 %v367, %v366
  %v467 = vpack.c.b16 %v369, %v368
  %v468 = vpack.c.b16 %v371, %v370
  %v469 = vpack.c.b16 %v373, %v372
  %v470 = vpack.c.b16 %v375, %v374
  %v471 = vpack.c.b16 %v377, %v376
  %v472 = vpack.c.b16 %v379, %v378
  %v473 = vpack.c.b16 %v381, %v380
  %v474 = vpack.c.b16 %v383, %v382
  %v475 = vpack.c.b16 %v385, %v384
  %v476 = vpack.c.b16 %v387, %v386
  %v477 = vpack.c.b16 %v389, %v388
  %v478 = vpack.c.b16 %v391, %v390
  %v479 = vpack.c.b16 %v393, %v392
  %v480 = vpack.c.b16 %v395, %v394
  %v481 = vpack.c.b16 %v397, %v396
  %v482 = vpack.c.b16 %v399, %v398
  %v483 = vpack.c.b16 %v401, %v400
  %v484 = vpack.c.b16 %v403, %v402
  %v485 = vpack.c.b16 %v405, %v404
  %v486 = vpack.c.b16 %v407, %v406
  %v487 = vpack.c.b16 %v409, %v408
  %v488 = vpack.c.b16 %v411, %v410
  %v489 = vpack.c.b16 %v413, %v412
  %v490 = vpack.c.b16 %v415, %v414
  %v491 = vpack.c.b16 %v417, %v416
  %v492 = vpack.c.b16 %v419, %v418
  %v493 = vpack.c.b16 %v421, %v420
  %v494 = vpack.c.b16 %v423, %v422
  %v495 = vpack.c.b16 %v425, %v424
  %v496 = vpack.c.b16 %v427, %v426
  %v497 = vpack.c.b16 %v429, %v428
  %v498 = vpack.c.b16 %v431, %v430
  %v499 = vpack.c.b16 %v433, %v432
  %v500 = vpack.c.b16 %v435, %v434
  %v501 = vpack.c.b16 %v437, %v436
  %566 = vmatprep.subr.bf16.mxu0 0
  %567 = vmatpush1.bf16.msra.mxu0 %v438
  %568 = vmatprep.subr.bf16.mxu0 0
  %569 = vmatpush1.bf16.msra.mxu0 %v439
  %570 = vmatprep.subr.bf16.mxu0 0
  %571 = vmatpush1.bf16.msra.mxu0 %v440
  %572 = vmatprep.subr.bf16.mxu0 0
  %573 = vmatpush1.bf16.msra.mxu0 %v441
  %574 = vmatprep.subr.bf16.mxu0 0
  %575 = vmatpush1.bf16.msra.mxu0 %v442
  %576 = vmatprep.subr.bf16.mxu0 0
  %577 = vmatpush1.bf16.msra.mxu0 %v443
  %578 = vmatprep.subr.bf16.mxu0 0
  %579 = vmatpush1.bf16.msra.mxu0 %v444
  %580 = vmatprep.subr.bf16.mxu0 0
  %581 = vmatpush1.bf16.msra.mxu0 %v445
  %582 = vmatprep.subr.bf16.mxu0 0
  %583 = vmatpush1.bf16.msra.mxu0 %v446
  %584 = vmatprep.subr.bf16.mxu0 0
  %585 = vmatpush1.bf16.msra.mxu0 %v447
  %586 = vmatprep.subr.bf16.mxu0 0
  %587 = vmatpush1.bf16.msra.mxu0 %v448
  %588 = vmatprep.subr.bf16.mxu0 0
  %589 = vmatpush1.bf16.msra.mxu0 %v449
  %590 = vmatprep.subr.bf16.mxu0 0
  %591 = vmatpush1.bf16.msra.mxu0 %v450
  %592 = vmatprep.subr.bf16.mxu0 0
  %593 = vmatpush1.bf16.msra.mxu0 %v451
  %594 = vmatprep.subr.bf16.mxu0 0
  %595 = vmatpush1.bf16.msra.mxu0 %v452
  %596 = vmatprep.subr.bf16.mxu0 0
  %597 = vmatpush1.bf16.msra.mxu0 %v453
  %598 = vmatprep.mubr.bf16.mxu0 %v167
  %599 = vmatmul.mubr.bf16.gmra.mrb[0].mxu0 %v166
  %v600 = vpop.f32.mrb[0].mxu0
  %v601 = vadd.f32 %v152, %v600
  %v602 = vpop.f32.mrb[0].mxu0
  %v603 = vpop.f32.mrb[0].mxu0
  %v604 = vpop.f32.mrb[0].mxu0
  %605 = vdwg.mxu0
  %606 = vmatprep.subr.bf16.mxu0 0
  %607 = vmatpush1.bf16.msra.mxu0 %v454
  %608 = vmatprep.subr.bf16.mxu0 0
  %609 = vmatpush1.bf16.msra.mxu0 %v455
  %610 = vmatprep.subr.bf16.mxu0 0
  %611 = vmatpush1.bf16.msra.mxu0 %v456
  %612 = vmatprep.subr.bf16.mxu0 0
  %613 = vmatpush1.bf16.msra.mxu0 %v457
  %614 = vmatprep.subr.bf16.mxu0 0
  %615 = vmatpush1.bf16.msra.mxu0 %v458
  %616 = vmatprep.subr.bf16.mxu0 0
  %617 = vmatpush1.bf16.msra.mxu0 %v459
  %618 = vmatprep.subr.bf16.mxu0 0
  %619 = vmatpush1.bf16.msra.mxu0 %v460
  %620 = vmatprep.subr.bf16.mxu0 0
  %621 = vmatpush1.bf16.msra.mxu0 %v461
  %622 = vmatprep.subr.bf16.mxu0 0
  %623 = vmatpush1.bf16.msra.mxu0 %v462
  %624 = vmatprep.subr.bf16.mxu0 0
  %625 = vmatpush1.bf16.msra.mxu0 %v463
  %626 = vmatprep.subr.bf16.mxu0 0
  %627 = vmatpush1.bf16.msra.mxu0 %v464
  %628 = vmatprep.subr.bf16.mxu0 0
  %629 = vmatpush1.bf16.msra.mxu0 %v465
  %630 = vmatprep.subr.bf16.mxu0 0
  %631 = vmatpush1.bf16.msra.mxu0 %v466
  %632 = vmatprep.subr.bf16.mxu0 0
  %633 = vmatpush1.bf16.msra.mxu0 %v467
  %634 = vmatprep.subr.bf16.mxu0 0
  %635 = vmatpush1.bf16.msra.mxu0 %v468
  %636 = vmatprep.subr.bf16.mxu0 0
  %637 = vmatpush1.bf16.msra.mxu0 %v469
  %638 = vmatprep.mubr.bf16.mxu0 %v169
  %639 = vmatmul.mubr.bf16.gmra.mrb[0].mxu0 %v168
  %v640 = vpop.f32.mrb[0].mxu0
  %v641 = vadd.f32 %v601, %v640
  %v642 = vpop.f32.mrb[0].mxu0
  %v643 = vpop.f32.mrb[0].mxu0
  %v644 = vpop.f32.mrb[0].mxu0
  %645 = vdwg.mxu0
  %646 = vmatprep.subr.bf16.mxu0 0
  %647 = vmatpush1.bf16.msra.mxu0 %v470
  %648 = vmatprep.subr.bf16.mxu0 0
  %649 = vmatpush1.bf16.msra.mxu0 %v471
  %650 = vmatprep.subr.bf16.mxu0 0
  %651 = vmatpush1.bf16.msra.mxu0 %v472
  %652 = vmatprep.subr.bf16.mxu0 0
  %653 = vmatpush1.bf16.msra.mxu0 %v473
  %654 = vmatprep.subr.bf16.mxu0 0
  %655 = vmatpush1.bf16.msra.mxu0 %v474
  %656 = vmatprep.subr.bf16.mxu0 0
  %657 = vmatpush1.bf16.msra.mxu0 %v475
  %658 = vmatprep.subr.bf16.mxu0 0
  %659 = vmatpush1.bf16.msra.mxu0 %v476
  %660 = vmatprep.subr.bf16.mxu0 0
  %661 = vmatpush1.bf16.msra.mxu0 %v477
  %662 = vmatprep.subr.bf16.mxu0 0
  %663 = vmatpush1.bf16.msra.mxu0 %v478
  %664 = vmatprep.subr.bf16.mxu0 0
  %665 = vmatpush1.bf16.msra.mxu0 %v479
  %666 = vmatprep.subr.bf16.mxu0 0
  %667 = vmatpush1.bf16.msra.mxu0 %v480
  %668 = vmatprep.subr.bf16.mxu0 0
  %669 = vmatpush1.bf16.msra.mxu0 %v481
  %670 = vmatprep.subr.bf16.mxu0 0
  %671 = vmatpush1.bf16.msra.mxu0 %v482
  %672 = vmatprep.subr.bf16.mxu0 0
  %673 = vmatpush1.bf16.msra.mxu0 %v483
  %674 = vmatprep.subr.bf16.mxu0 0
  %675 = vmatpush1.bf16.msra.mxu0 %v484
  %676 = vmatprep.subr.bf16.mxu0 0
  %677 = vmatpush1.bf16.msra.mxu0 %v485
  %678 = vmatprep.mubr.bf16.mxu0 %v171
  %679 = vmatmul.mubr.bf16.gmra.mrb[0].mxu0 %v170
  %v680 = vpop.f32.mrb[0].mxu0
  %v681 = vadd.f32 %v641, %v680
  %v682 = vpop.f32.mrb[0].mxu0
  %v683 = vpop.f32.mrb[0].mxu0
  %v684 = vpop.f32.mrb[0].mxu0
  %685 = vdwg.mxu0
  %686 = vmatprep.subr.bf16.mxu0 0
  %687 = vmatpush1.bf16.msra.mxu0 %v486
  %688 = vmatprep.subr.bf16.mxu0 0
  %689 = vmatpush1.bf16.msra.mxu0 %v487
  %690 = vmatprep.subr.bf16.mxu0 0
  %691 = vmatpush1.bf16.msra.mxu0 %v488
  %692 = vmatprep.subr.bf16.mxu0 0
  %693 = vmatpush1.bf16.msra.mxu0 %v489
  %694 = vmatprep.subr.bf16.mxu0 0
  %695 = vmatpush1.bf16.msra.mxu0 %v490
  %696 = vmatprep.subr.bf16.mxu0 0
  %697 = vmatpush1.bf16.msra.mxu0 %v491
  %698 = vmatprep.subr.bf16.mxu0 0
  %699 = vmatpush1.bf16.msra.mxu0 %v492
  %700 = vmatprep.subr.bf16.mxu0 0
  %701 = vmatpush1.bf16.msra.mxu0 %v493
  %702 = vmatprep.subr.bf16.mxu0 0
  %703 = vmatpush1.bf16.msra.mxu0 %v494
  %704 = vmatprep.subr.bf16.mxu0 0
  %705 = vmatpush1.bf16.msra.mxu0 %v495
  %706 = vmatprep.subr.bf16.mxu0 0
  %707 = vmatpush1.bf16.msra.mxu0 %v496
  %708 = vmatprep.subr.bf16.mxu0 0
  %709 = vmatpush1.bf16.msra.mxu0 %v497
  %710 = vmatprep.subr.bf16.mxu0 0
  %711 = vmatpush1.bf16.msra.mxu0 %v498
  %712 = vmatprep.subr.bf16.mxu0 0
  %713 = vmatpush1.bf16.msra.mxu0 %v499
  %714 = vmatprep.subr.bf16.mxu0 0
  %715 = vmatpush1.bf16.msra.mxu0 %v500
  %716 = vmatprep.subr.bf16.mxu0 0
  %717 = vmatpush1.bf16.msra.mxu0 %v501
  %718 = vmatprep.mubr.bf16.mxu0 %v173
  %719 = vmatmul.mubr.bf16.gmra.mrb[0].mxu0 %v172
  %v720 = vpop.f32.mrb[0].mxu0
  %v721 = vadd.f32 %v681, %v720
  %v722 = vpop.f32.mrb[0].mxu0
  %v723 = vpop.f32.mrb[0].mxu0
  %v724 = vpop.f32.mrb[0].mxu0
  %725 = vdwg.mxu0
  %726 = vst [vmem:[%s3] sm:$0xff] %v721
  // Predicated region
  $region14: #{patch_embedding_forward.1} parent=0 // pred_check
    _
  $region15: #{patch_embedding_forward.1} parent=0 // pred_check_branch
    %728 = sbr.rel (0) target = $region17
  $region16: #{patch_embedding_forward.1} parent=0 // pred_region
    _
  $region17: #{patch_embedding_forward.1} parent=0 // pred_fallthru
    _
  // Predicated region
  $region18: #{patch_embedding_forward.1} parent=0 // pred_check
    _
  $region19: #{patch_embedding_forward.1} parent=0 // pred_check_branch
    %730 = sbr.rel (0) target = $region21
  $region20: #{patch_embedding_forward.1} parent=0 // pred_region
    _
  $region21: #{patch_embedding_forward.1} parent=0 // pred_fallthru
    _

</llo_original>
